<compile_context>
chip_gen: v5e
topology: v5e:2x2
jax: 0.10.0
libtpu: 0.0.40
codegen_flags: <defaults>
</compile_context>

<pallas_src>
import jax
import jax.numpy as jnp
from jax.experimental import pallas as pl
from jax.experimental.pallas import tpu as pltpu


def _round_up(x: int, m: int) -> int:
    return ((x + m - 1) // m) * m


# ----------------------------- Pallas kernel --------------------------------
def _pointwise_conv_kernel(x_ref, w_ref, b_ref, o_ref):
    # x_ref: (1, Cin, S_TILE)   channels on sublanes, spatial on lanes
    # w_ref: (n_sel, Cin)       pre-sliced to the selected output channels
    # b_ref: (n_sel, 1)
    # o_ref: (1, n_sel, S_TILE) lane-dense output
    x = x_ref[0]  # (Cin, S_TILE)
    # Tiny M/K matmul is fine: this kernel is irreducibly HBM-bound, the MXU
    # is nowhere near the binding slot.
    acc = jnp.dot(w_ref[...], x, preferred_element_type=jnp.float32)  # (n_sel, S_TILE)
    o_ref[0] = (acc + b_ref[...]).astype(o_ref.dtype)


def pointwise_conv_selected(x3: jax.Array, w_sel: jax.Array, b_sel: jax.Array,
                            *, max_tile: int = 8192) -> jax.Array:
    """out[b, c, s] = sum_k w_sel[c, k] * x3[b, k, s] + b_sel[c, 0].

    x3: [B, Cin, S]   w_sel: [n_sel, Cin]   b_sel: [n_sel, 1]
    Returns: [B, n_sel, S]
    """
    B, Cin, S = x3.shape
    n_sel = w_sel.shape[0]
    dtype = x3.dtype

    # Choose a large lane-dense tile (multiple of 128) that keeps padding small.
    num_tiles = int(pl.cdiv(S, max_tile))
    s_tile = _round_up(int(pl.cdiv(S, num_tiles)), 128)
    s_pad = num_tiles * s_tile
    if s_pad != S:
        # Rare path (only when the volume isn't 128-aligned); keeps the kernel
        # free of masked partial blocks.
        x3 = jnp.pad(x3, ((0, 0), (0, 0), (0, s_pad - S)))

    itemsize = jnp.dtype(dtype).itemsize
    flops = 2 * B * s_pad * Cin * n_sel
    bytes_accessed = (B * Cin * s_pad * itemsize            # input read
                      + B * n_sel * s_pad * itemsize        # output write
                      + w_sel.size * jnp.dtype(w_sel.dtype).itemsize
                      + b_sel.size * jnp.dtype(b_sel.dtype).itemsize)

    out = pl.pallas_call(
        _pointwise_conv_kernel,
        out_shape=jax.ShapeDtypeStruct((B, n_sel, s_pad), dtype),
        grid_spec=pltpu.PrefetchScalarGridSpec(
            num_scalar_prefetch=0,
            grid=(B, num_tiles),
            in_specs=[
                pl.BlockSpec((1, Cin, s_tile), lambda b, s: (b, 0, s)),  # activations
                pl.BlockSpec((n_sel, Cin), lambda b, s: (0, 0)),         # weight (resident)
                pl.BlockSpec((n_sel, 1), lambda b, s: (0, 0)),           # bias (resident)
            ],
            out_specs=pl.BlockSpec((1, n_sel, s_tile), lambda b, s: (b, 0, s)),
        ),
        compiler_params=pltpu.CompilerParams(
            dimension_semantics=("parallel", "parallel")),
        cost_estimate=pl.CostEstimate(
            flops=flops, transcendentals=0, bytes_accessed=bytes_accessed),
    )(x3, w_sel, b_sel)

    if s_pad != S:
        out = out[:, :, :S]
    return out


# ------------------------------ Wrapper --------------------------------------
class UnetrPtrJitWrapperPallas:
    def __init__(self, conv_weight: jax.Array, conv_bias: jax.Array,
                 selected_channels: tuple[int, ...] = (0,)):
        # conv_weight: [Cout, Cin, 1, 1, 1] (PyTorch Conv3d, kernel_size=1)
        # conv_bias:   [Cout]
        self.selected_channels = tuple(selected_channels)
        sel = jnp.asarray(self.selected_channels, dtype=jnp.int32)
        # Only the selected output channels are ever needed -> slice params up
        # front so the kernel never computes / writes the discarded channels.
        self.w_sel = jnp.take(conv_weight[:, :, 0, 0, 0], sel, axis=0)  # [n_sel, Cin]
        self.b_sel = jnp.take(conv_bias, sel, axis=0).reshape(-1, 1)    # [n_sel, 1]
        # NOTE: casting x / w_sel / output to bfloat16 would halve HBM bytes on
        # all generations; kept in float32 here to match PyTorch semantics.

    def __call__(self, x: jax.Array) -> jax.Array:
        # x: [B, Cin, D, H, W]  (NCDHW, matching PyTorch)
        B, Cin, D, H, W = x.shape
        n_sel = self.w_sel.shape[0]
        # TODO(synk): the injected UNETR backbone (ViT encoder + deconv decoder)
        # is not reproduced; only its final 1x1x1 Conv3d head runs here.
        x3 = x.reshape(B, Cin, D * H * W)  # contiguous reshape, no transpose
        out3 = pointwise_conv_selected(x3, self.w_sel, self.b_sel)
        return out3.reshape(B, n_sel, D, H, W)


# ------------------------------ Main -----------------------------------------
if __name__ == "__main__":
    key = jax.random.PRNGKey(0)
    k_x, k_w, k_b = jax.random.split(key, 3)

    # Small shapes consistent with a 3D volumetric model input (NCDHW).
    B, Cin, D, H, W = 2, 4, 8, 8, 8
    Cout = 16
    selected_channels = (0, 2)

    x = jax.random.normal(k_x, (B, Cin, D, H, W), dtype=jnp.float32)
    conv_w = jax.random.normal(k_w, (Cout, Cin, 1, 1, 1), dtype=jnp.float32) * 0.1
    conv_b = jax.random.normal(k_b, (Cout,), dtype=jnp.float32) * 0.1

    model = UnetrPtrJitWrapperPallas(conv_w, conv_b, selected_channels)
    out = jax.block_until_ready(model(x))

    # Pure-JAX reference: full conv1x1x1 head, then wrapper channel selection.
    w2d = conv_w[:, :, 0, 0, 0]  # (Cout, Cin)
    ref_full = jnp.einsum("bcdhw,kc->bkdhw", x, w2d) + conv_b[None, :, None, None, None]
    ref = ref_full[:, jnp.asarray(selected_channels), ...]

    assert out.shape == (B, len(selected_channels), D, H, W), out.shape
    assert jnp.allclose(out, ref, atol=1e-5, rtol=1e-5), float(jnp.max(jnp.abs(out - ref)))
    print("KERNEL_OK")
</pallas_src>

<mosaic_0001>
module attributes {stable_mosaic.version = 11 : i64} {
  func.func @_pointwise_conv_kernel(%arg0: i32, %arg1: i32, %arg2: memref<1x4x512xf32, #tpu.memory_space<vmem>>, %arg3: memref<2x4xf32, #tpu.memory_space<vmem>>, %arg4: memref<2x1xf32, #tpu.memory_space<vmem>>, %arg5: memref<1x2x512xf32, #tpu.memory_space<vmem>>) attributes {dimension_semantics = [#tpu.dimension_semantics<parallel>, #tpu.dimension_semantics<parallel>], iteration_bounds = array<i64: 2, 1>, scalar_prefetch = 0 : i64, scratch_operands = 0 : i64, tpu.core_type = #tpu.core_type<tc>, window_params = [{transform_indices = @transform_0, window_bounds = array<i64: 1, 4, 512>}, {pipeline_mode = #tpu.pipeline_mode<synchronous>, transform_indices = @transform_1, window_bounds = array<i64: 2, 4>}, {pipeline_mode = #tpu.pipeline_mode<synchronous>, transform_indices = @transform_2, window_bounds = array<i64: 2, 1>}, {transform_indices = @transform_3, window_bounds = array<i64: 1, 2, 512>}]} {
    %c0 = arith.constant 0 : index
    %c0_0 = arith.constant 0 : index
    %c0_1 = arith.constant 0 : index
    %0 = vector.load %arg2[%c0, %c0_0, %c0_1] : memref<1x4x512xf32, #tpu.memory_space<vmem>>, vector<1x4x512xf32>
    %1 = vector.shape_cast %0 : vector<1x4x512xf32> to vector<4x512xf32>
    %c0_2 = arith.constant 0 : index
    %c0_3 = arith.constant 0 : index
    %2 = vector.load %arg3[%c0_2, %c0_3] : memref<2x4xf32, #tpu.memory_space<vmem>>, vector<2x4xf32>
    %cst = arith.constant dense<0.000000e+00> : vector<2x512xf32>
    %3 = tpu.matmul %2, %1, %cst {dimension_numbers = #tpu.dot_dimension_numbers<[1], [0], [0], [1], [0, 0, 1, 1], [], []>} : vector<2x4xf32>, vector<4x512xf32>, vector<2x512xf32> -> vector<2x512xf32>
    %c0_4 = arith.constant 0 : index
    %c0_5 = arith.constant 0 : index
    %4 = vector.load %arg4[%c0_4, %c0_5] : memref<2x1xf32, #tpu.memory_space<vmem>>, vector<2x1xf32>
    %5 = vector.broadcast %4 : vector<2x1xf32> to vector<2x512xf32>
    %6 = arith.addf %3, %5 : vector<2x512xf32>
    %c0_6 = arith.constant 0 : index
    %c0_7 = arith.constant 0 : index
    %c0_8 = arith.constant 0 : index
    %7 = vector.load %arg5[%c0_6, %c0_7, %c0_8] : memref<1x2x512xf32, #tpu.memory_space<vmem>>, vector<1x2x512xf32>
    %8 = vector.shape_cast %7 : vector<1x2x512xf32> to vector<2x512xf32>
    %9 = vector.shape_cast %6 : vector<2x512xf32> to vector<1x2x512xf32>
    tpu.vector_store %arg5[%c0_6, %c0_7, %c0_8], %9 {strides = array<i32>} : memref<1x2x512xf32, #tpu.memory_space<vmem>>, vector<1x2x512xf32>,
    return
  }
  func.func @transform_0(%arg0: i32, %arg1: i32) -> (i32, i32, i32) {
    %c0_i32 = arith.constant 0 : i32
    %c0_i32_0 = arith.constant 0 : i32
    return %arg0, %c0_i32, %arg1 : i32, i32, i32
  }
  func.func @transform_1(%arg0: i32, %arg1: i32) -> (i32, i32) {
    %c0_i32 = arith.constant 0 : i32
    %c0_i32_0 = arith.constant 0 : i32
    %c0_i32_1 = arith.constant 0 : i32
    return %c0_i32, %c0_i32_0 : i32, i32
  }
  func.func @transform_2(%arg0: i32, %arg1: i32) -> (i32, i32) {
    %c0_i32 = arith.constant 0 : i32
    %c0_i32_0 = arith.constant 0 : i32
    %c0_i32_1 = arith.constant 0 : i32
    return %c0_i32, %c0_i32_0 : i32, i32
  }
  func.func @transform_3(%arg0: i32, %arg1: i32) -> (i32, i32, i32) {
    %c0_i32 = arith.constant 0 : i32
    %c0_i32_0 = arith.constant 0 : i32
    return %arg0, %c0_i32, %arg1 : i32, i32, i32
  }
}

</mosaic_0001>

<llo_original>
// kernel: tpu_custom_call.1
$region0: #{tpu_custom_call.1}
  #allocation0 [shape = 'u32[]', space=smem, size = 0x4, offset = 0x4, fixed_abs, tag = 'smem constant byte address 0x4 - core index']
  #allocation1 [shape = 'u32[72,128]{1,0:T(1,128)}', space=vmem, size = 0x9000, scoped, tag = 'internal scratch']
  %s0 = inlined_call_operand.hbm [shape: f32[2,4,512], index: 0, kind: input, shape index: {}]
  %s1 = inlined_call_operand.vmem [shape: f32[2,4], index: 1, kind: input, shape index: {}]
  %s2 = inlined_call_operand.vmem [shape: f32[2,1], index: 2, kind: input, shape index: {}]
  %s3 = inlined_call_operand.hbm [shape: f32[2,2,512], index: 3, kind: output, shape index: {}]
  %s4 = sld [smem:[#allocation0]]
  $region49: #{tpu_custom_call.1} parent=0
    _
  %s6 = ssub.s32 1, %s4
  %s7 = scalar_select 0, %s6, %s4
  $region1: #{tpu_custom_call.1} parent=0
    #allocation2 [shape = 'u8[16384]{0}', space=vmem, size = 0x4000, scoped, tag = 'input window, operand 0']
    #allocation3 [shape = 's32[2]{0}', space=sflag, size = 0x8, scoped, tag = 'scoped memory for tpu_custom_call.1']
    #allocation4 [shape = 's32[2]{0}', space=sflag, size = 0x8, scoped, tag = 'scoped memory for tpu_custom_call.1']
    #allocation5 [shape = 'u8[8192]{0}', space=vmem, size = 0x2000, scoped, tag = 'output window, operand 0']
    %8 = vsyncpa [#allocation3], 0
    %s9 = scalar_lea.sflag [#allocation3], 1
    %10 = vsyncpa %s9, 0
    %11 = vsyncpa [#allocation4], 0
    %s12 = scalar_lea.sflag [#allocation4], 1
    %13 = vsyncpa %s12, 0
    loop: start=0, step=1, limit=4
    $region2: #{tpu_custom_call.1} parent=1 // loop_pre_header
      _
    $region3: #{tpu_custom_call.1} parent=1 // loop_header
      %s15 = sphi 0, %s19
      %p16 = scmp.ge.s32.totalorder %s15, 4
      %s22 = sphi 0, %s34
      %s23 = sphi 0, %s30
      %s24 = sphi 0, %s22
      %s25 = sphi 0, %s23
      %s26 = sphi 0, %s24
      %s27 = sphi 0, %s25
      %s39 = sphi 0, %s41
      %s42 = sphi 0, %s39
      %s43 = sphi 0, %s42
      %s59 = sphi 0, %s43
      %s63 = sphi 0, %s63
      %s65 = sphi 0, %s63
      %s66 = sphi 0, %s65
      %s80 = sphi 0, %s66
      %s84 = sphi 0, %s84
      %s86 = sphi 0, %s84
      %s87 = sphi 0, %s86
      %s101 = sphi 0, %s87
      %s109 = sphi 0, %s111
      %s112 = sphi 0, %s109
      %s113 = sphi 0, %s112
      %s129 = sphi 0, %s113
    $region4: #{tpu_custom_call.1} parent=1 // loop_header_branch
      %18 = sbr.rel (%p16) target = $region8
    $region5: #{tpu_custom_call.1} parent=1 // loop_body
      %s20 = ssub.s32 %s15, 1
      %s21 = ssub.s32 %s15, 2
      %s28 = sadd.s32 1, %s23
      %p29 = scmp.ge.s32.totalorder %s28, 1
      %s30 = scalar_select %p29, 0, %s28
      %s31 = sadd.s32 1, %s22
      %s32 = scalar_select %p29, %s31, %s22
      %p33 = scmp.ge.s32.totalorder %s32, 2
      %s34 = scalar_select %p33, 0, %s32
      %s35 = ssub.s32 %s22, %s34
      %s36 = ssub.s32 %s23, %s30
      %s37 = sor.u32 %s35, %s36
      %p38 = scmp.eq.s32.totalorder %s37, 0
      %s40 = sadd.s32 %s39, 1
      %s41 = scalar_select %p38, %s39, %s40
      %p44 = pneg %p38
      %p45 = scmp.eq.s32.totalorder %s15, 1
      %p46 = por %p44, %p45
      %p47 = scmp.ne.s32.totalorder %s39, %s42
      %p48 = scmp.eq.s32.totalorder %s15, 0
      %p49 = por %p47, %p48
      %p50 = scmp.ne.s32.totalorder %s39, %s42
      %p51 = scmp.eq.s32.totalorder %s20, 1
      %p52 = por %p50, %p51
      %p53 = scmp.ne.s32.totalorder %s42, %s43
      %p54 = scmp.eq.s32.totalorder %s20, 0
      %p55 = por %p53, %p54
      %p56 = scmp.ne.s32.totalorder %s42, %s43
      %p57 = scmp.eq.s32.totalorder %s21, 1
      %p58 = por %p56, %p57
      %p60 = scmp.ne.s32.totalorder %s43, %s59
      %p61 = scmp.eq.s32.totalorder %s21, 0
      %p62 = por %p60, %p61
      %s64 = sadd.s32 %s63, 1
      %p67 = scmp.eq.s32.totalorder %s15, 1
      %p68 = scmp.ne.s32.totalorder %s63, %s65
      %p69 = scmp.eq.s32.totalorder %s15, 0
      %p70 = por %p68, %p69
      %p71 = scmp.ne.s32.totalorder %s63, %s65
      %p72 = scmp.eq.s32.totalorder %s20, 1
      %p73 = por %p71, %p72
      %p74 = scmp.ne.s32.totalorder %s65, %s66
      %p75 = scmp.eq.s32.totalorder %s20, 0
      %p76 = por %p74, %p75
      %p77 = scmp.ne.s32.totalorder %s65, %s66
      %p78 = scmp.eq.s32.totalorder %s21, 1
      %p79 = por %p77, %p78
      %p81 = scmp.ne.s32.totalorder %s66, %s80
      %p82 = scmp.eq.s32.totalorder %s21, 0
      %p83 = por %p81, %p82
      %s85 = sadd.s32 %s84, 1
      %p88 = scmp.eq.s32.totalorder %s15, 1
      %p89 = scmp.ne.s32.totalorder %s84, %s86
      %p90 = scmp.eq.s32.totalorder %s15, 0
      %p91 = por %p89, %p90
      %p92 = scmp.ne.s32.totalorder %s84, %s86
      %p93 = scmp.eq.s32.totalorder %s20, 1
      %p94 = por %p92, %p93
      %p95 = scmp.ne.s32.totalorder %s86, %s87
      %p96 = scmp.eq.s32.totalorder %s20, 0
      %p97 = por %p95, %p96
      %p98 = scmp.ne.s32.totalorder %s86, %s87
      %p99 = scmp.eq.s32.totalorder %s21, 1
      %p100 = por %p98, %p99
      %p102 = scmp.ne.s32.totalorder %s87, %s101
      %p103 = scmp.eq.s32.totalorder %s21, 0
      %p104 = por %p102, %p103
      %s105 = ssub.s32 %s22, %s34
      %s106 = ssub.s32 %s23, %s30
      %s107 = sor.u32 %s105, %s106
      %p108 = scmp.eq.s32.totalorder %s107, 0
      %s110 = sadd.s32 %s109, 1
      %s111 = scalar_select %p108, %s109, %s110
      %p114 = pneg %p108
      %p115 = scmp.eq.s32.totalorder %s15, 1
      %p116 = por %p114, %p115
      %p117 = scmp.ne.s32.totalorder %s109, %s112
      %p118 = scmp.eq.s32.totalorder %s15, 0
      %p119 = por %p117, %p118
      %p120 = scmp.ne.s32.totalorder %s109, %s112
      %p121 = scmp.eq.s32.totalorder %s20, 1
      %p122 = por %p120, %p121
      %p123 = scmp.ne.s32.totalorder %s112, %s113
      %p124 = scmp.eq.s32.totalorder %s20, 0
      %p125 = por %p123, %p124
      %p126 = scmp.ne.s32.totalorder %s112, %s113
      %p127 = scmp.eq.s32.totalorder %s21, 1
      %p128 = por %p126, %p127
      %p130 = scmp.ne.s32.totalorder %s113, %s129
      %p131 = scmp.eq.s32.totalorder %s21, 0
      %p132 = por %p130, %p131
      %p133 = scmp.le.s32.totalorder 1, %s15
      %p134 = scmp.lt.s32.totalorder %s15, 3
      %p135 = pnand %p133, %p134
      %p136 = pneg %p135
      // Predicated region
      $region9: #{tpu_custom_call.1} parent=5 // pred_check
        _
      $region10: #{tpu_custom_call.1} parent=5 // pred_check_branch
        %138 = sbr.rel (%p135) target = $region12
      $region11: #{tpu_custom_call.1} parent=5 // pred_region
        %s139 = ssub.s32 %s15, 1
        // Predicated region
        $region13: #{tpu_custom_call.1} parent=11 // pred_check
          %p140 = pneg %p76
        $region14: #{tpu_custom_call.1} parent=11 // pred_check_branch
          %142 = sbr.rel (%p140) target = $region16
        $region15: #{tpu_custom_call.1} parent=11 // pred_region
          _
        $region16: #{tpu_custom_call.1} parent=11 // pred_fallthru
          _
        // Predicated region
        $region17: #{tpu_custom_call.1} parent=11 // pred_check
          %p143 = pneg %p97
        $region18: #{tpu_custom_call.1} parent=11 // pred_check_branch
          %145 = sbr.rel (%p143) target = $region20
        $region19: #{tpu_custom_call.1} parent=11 // pred_region
          _
        $region20: #{tpu_custom_call.1} parent=11 // pred_fallthru
          _
      $region12: #{tpu_custom_call.1} parent=5 // pred_fallthru
        _
      %p146 = scmp.lt.s32.totalorder %s15, 2
      // Predicated region
      $region21: #{tpu_custom_call.1} parent=5 // pred_check
        %p147 = pneg %p146
      $region22: #{tpu_custom_call.1} parent=5 // pred_check_branch
        %149 = sbr.rel (%p147) target = $region24
      $region23: #{tpu_custom_call.1} parent=5 // pred_region
        // Predicated region
        $region25: #{tpu_custom_call.1} parent=23 // pred_check
          %p150 = pneg %p49
        $region26: #{tpu_custom_call.1} parent=23 // pred_check_branch
          %152 = sbr.rel (%p150) target = $region28
        $region27: #{tpu_custom_call.1} parent=23 // pred_region
          %s153 = sand.u32 %s39, 1
          %s154 = scalar_lea.sflag [#allocation3], %s153
          %s155 = sand.u32 %s39, 1
          %s156 = smul.addr %s155, 16
          %s157 = scalar_lea.vmem [#allocation2], %s156
          %s158 = smul.u32 4, %s23
          %160 = vsyncadd %s154, 0
          %s161 = smul.addr %s22, 4
          %s162 = sadd.s32 %s158, %s161
          %s163 = smul.addr %s162, 4
          %s164 = scalar_lea.hbm %s0, %s163
          %s166 = sshll.u32 %s164, 4
          %s167 = int_to_ptr.hbm [resolvable:$true] %s166
          %s168 = sshll.u32 %s157, 4
          %s169 = int_to_ptr.vmem [resolvable:$true] %s168
          %171 = dma.hbm_to_vmem [thread:$0]  %s167, 256, %s169, %s154
        $region28: #{tpu_custom_call.1} parent=23 // pred_fallthru
          _
      $region24: #{tpu_custom_call.1} parent=5 // pred_fallthru
        _
      %p172 = scmp.le.s32.totalorder 1, %s15
      %p173 = scmp.lt.s32.totalorder %s15, 3
      %p174 = pnand %p172, %p173
      %p175 = pneg %p174
      // Predicated region
      $region29: #{tpu_custom_call.1} parent=5 // pred_check
        _
      $region30: #{tpu_custom_call.1} parent=5 // pred_check_branch
        %177 = sbr.rel (%p174) target = $region32
      $region31: #{tpu_custom_call.1} parent=5 // pred_region
        %s178 = ssub.s32 %s15, 1
        %s179 = sand.u32 %s42, 1
        %s180 = scalar_lea.sflag [#allocation3], %s179
        %s181 = sand.u32 %s42, 1
        %s182 = smul.addr %s181, 16
        %s183 = scalar_lea.vmem [#allocation2], %s182
        // Predicated region
        $region33: #{tpu_custom_call.1} parent=31 // pred_check
          %p184 = pneg %p55
        $region34: #{tpu_custom_call.1} parent=31 // pred_check_branch
          %186 = sbr.rel (%p184) target = $region36
        $region35: #{tpu_custom_call.1} parent=31 // pred_region
          %188 = dma.done %s180, 256
        $region36: #{tpu_custom_call.1} parent=31 // pred_fallthru
          _
        %s189 = sand.u32 %s42, 1
        %s190 = scalar_lea.sflag [#allocation3], %s189
        %s191 = sand.u32 %s42, 1
        %s192 = smul.addr %s191, 16
        %s193 = scalar_lea.vmem [#allocation2], %s192
        %p194 = pneg %p55
        %p195 = pneg %p52
        %p196 = pneg %p76
        %p197 = pneg %p73
        %p198 = pneg %p97
        %p199 = pneg %p94
        %p200 = pneg %p125
        %p201 = pneg %p122
        %s202 = sand.u32 %s112, 1
        %s203 = scalar_lea.sflag [#allocation4], %s202
        %s204 = sand.u32 %s112, 1
        %s205 = smul.addr %s204, 8
        %s206 = scalar_lea.vmem [#allocation5], %s205
        %s207 = smul.u32 4, %s25
        %s208 = smul.u32 4, %s25
        %v209 = vld [vmem:[%s183] sm:$0xff]
        %v210 = vld [vmem:[%s183 + $0x8] sm:$0xff]
        %v211 = vld [vmem:[%s1] sm:$0x3]
        %v212 = vld [vmem:[%s2] sm:$0x3]
        %214 = vset.pattern.permute.xlu0 0
        %215 = vperm.xlu0 %214, %v212
        %v216 = vpop.permute.xlu0 %215
        %220 = vst [vmem:[#allocation1] ss:$2 sm:$0xff] %v209
        %s221 = scalar_lea.vmem [#allocation1], 16
        %222 = vst [vmem:[%s221] ss:$2 sm:$0xff] %v210
        %v223 = vld.sshfl [vmem:[#allocation1] sm:$0xff pattern:$0x75316420]
        %v224 = vld.sshfl [vmem:[#allocation1 + $0x8] sm:$0xff pattern:$0x75316420]
        %v225 = vld.sshfl [vmem:[#allocation1 + $0x10] sm:$0xff pattern:$0x75316420]
        %v226 = vld.sshfl [vmem:[#allocation1 + $0x18] sm:$0xff pattern:$0x75316420]
        %vm227 = vcmask 31744
        %v229 = vsel %vm227, %v211, 0
        %vm231 = vcmask 1043456
        %v232 = vsel %vm231, %v223, 0
        %v234 = vsel %vm231, %v224, 0
        %v236 = vsel %vm231, %v225, 0
        %v238 = vsel %vm231, %v226, 0
        %240 = vmatpush.msra.mxu0 0.0
        %241 = vmatpush.msra.mxu0 0.0
        %242 = vmatpush.msra.mxu0 0.0
        %243 = vmatpush.msra.mxu0 0.0
        %244 = vmatpush.msra.mxu0 0.0
        %245 = vmatpush.msra.mxu0 0.0
        %246 = vmatpush.msra.mxu0 0.0
        %247 = vmatpush.msra.mxu0 0.0
        %248 = vmatpush.msra.mxu0 0.0
        %249 = vmatpush.msra.mxu0 0.0
        %250 = vmatpush.msra.mxu0 0.0
        %251 = vmatpush.msra.mxu0 0.0
        %252 = vmatpush.msra.mxu0 0.0
        %253 = vmatpush.msra.mxu0 0.0
        %254 = vmatpush.msra.mxu0 0.0
        %255 = vmatpush.msra.mxu0 %v232
        %256 = vmatmul.f32.gmra.mxu0 %v229
        %v257 = vpop.f32.mrf.mxu0
        %v258 = vadd.f32 %v216, %v257
        %259 = vdwg.mxu0
        %260 = vmatpush.msra.mxu0 0.0
        %261 = vmatpush.msra.mxu0 0.0
        %262 = vmatpush.msra.mxu0 0.0
        %263 = vmatpush.msra.mxu0 0.0
        %264 = vmatpush.msra.mxu0 0.0
        %265 = vmatpush.msra.mxu0 0.0
        %266 = vmatpush.msra.mxu0 0.0
        %267 = vmatpush.msra.mxu0 0.0
        %268 = vmatpush.msra.mxu0 0.0
        %269 = vmatpush.msra.mxu0 0.0
        %270 = vmatpush.msra.mxu0 0.0
        %271 = vmatpush.msra.mxu0 0.0
        %272 = vmatpush.msra.mxu0 0.0
        %273 = vmatpush.msra.mxu0 0.0
        %274 = vmatpush.msra.mxu0 0.0
        %275 = vmatpush.msra.mxu0 %v234
        %276 = vmatmul.f32.gmra.mxu0 %v229
        %v277 = vpop.f32.mrf.mxu0
        %v278 = vadd.f32 %v216, %v277
        %279 = vdwg.mxu0
        %280 = vmatpush.msra.mxu0 0.0
        %281 = vmatpush.msra.mxu0 0.0
        %282 = vmatpush.msra.mxu0 0.0
        %283 = vmatpush.msra.mxu0 0.0
        %284 = vmatpush.msra.mxu0 0.0
        %285 = vmatpush.msra.mxu0 0.0
        %286 = vmatpush.msra.mxu0 0.0
        %287 = vmatpush.msra.mxu0 0.0
        %288 = vmatpush.msra.mxu0 0.0
        %289 = vmatpush.msra.mxu0 0.0
        %290 = vmatpush.msra.mxu0 0.0
        %291 = vmatpush.msra.mxu0 0.0
        %292 = vmatpush.msra.mxu0 0.0
        %293 = vmatpush.msra.mxu0 0.0
        %294 = vmatpush.msra.mxu0 0.0
        %295 = vmatpush.msra.mxu0 %v236
        %296 = vmatmul.f32.gmra.mxu0 %v229
        %v297 = vpop.f32.mrf.mxu0
        %v298 = vadd.f32 %v216, %v297
        %299 = vdwg.mxu0
        %300 = vmatpush.msra.mxu0 0.0
        %301 = vmatpush.msra.mxu0 0.0
        %302 = vmatpush.msra.mxu0 0.0
        %303 = vmatpush.msra.mxu0 0.0
        %304 = vmatpush.msra.mxu0 0.0
        %305 = vmatpush.msra.mxu0 0.0
        %306 = vmatpush.msra.mxu0 0.0
        %307 = vmatpush.msra.mxu0 0.0
        %308 = vmatpush.msra.mxu0 0.0
        %309 = vmatpush.msra.mxu0 0.0
        %310 = vmatpush.msra.mxu0 0.0
        %311 = vmatpush.msra.mxu0 0.0
        %312 = vmatpush.msra.mxu0 0.0
        %313 = vmatpush.msra.mxu0 0.0
        %314 = vmatpush.msra.mxu0 0.0
        %315 = vmatpush.msra.mxu0 %v238
        %316 = vmatmul.f32.gmra.mxu0 %v229
        %v317 = vpop.f32.mrf.mxu0
        %v318 = vadd.f32 %v216, %v317
        %319 = vdwg.mxu0
        %v324 = vrot.slane %v278, 6
        %v325 = vrot.slane %v298, 4
        %v326 = vrot.slane %v318, 2
        %vm327 = vcmask 1041408
        %v328 = vsel %vm327, %v258, %v324
        %vm329 = vcmask 1045508
        %v330 = vsel %vm329, %v325, %v326
        %v331 = vsel %vm231, %v328, %v330
        %333 = vst [vmem:[%s206] sm:$0xff] %v331
        %s334 = sand.u32 %s112, 1
        %s335 = scalar_lea.sflag [#allocation4], %s334
        %s336 = sand.u32 %s112, 1
        %s337 = smul.addr %s336, 8
        %s338 = scalar_lea.vmem [#allocation5], %s337
        // Predicated region
        $region37: #{tpu_custom_call.1} parent=31 // pred_check
          %p339 = pneg %p122
        $region38: #{tpu_custom_call.1} parent=31 // pred_check_branch
          %341 = sbr.rel (%p339) target = $region40
        $region39: #{tpu_custom_call.1} parent=31 // pred_region
          %s342 = smul.u32 4, %s25
          %344 = vsyncadd %s335, 0
          %s345 = smul.addr %s24, 4
          %s346 = sadd.s32 %s342, %s345
          %s347 = smul.addr %s346, 2
          %s348 = scalar_lea.hbm %s3, %s347
          %s350 = sshll.u32 %s338, 4
          %s351 = int_to_ptr.vmem [resolvable:$true] %s350
          %s352 = sshll.u32 %s348, 4
          %s353 = int_to_ptr.hbm [resolvable:$true] %s352
          %355 = dma.vmem_to_hbm [thread:$0]  %s351, 128, %s353, %s335
        $region40: #{tpu_custom_call.1} parent=31 // pred_fallthru
          _
      $region32: #{tpu_custom_call.1} parent=5 // pred_fallthru
        _
      %p356 = scmp.le.s32.totalorder 2, %s15
      // Predicated region
      $region41: #{tpu_custom_call.1} parent=5 // pred_check
        %p357 = pneg %p356
      $region42: #{tpu_custom_call.1} parent=5 // pred_check_branch
        %359 = sbr.rel (%p357) target = $region44
      $region43: #{tpu_custom_call.1} parent=5 // pred_region
        %s360 = ssub.s32 %s15, 2
        // Predicated region
        $region45: #{tpu_custom_call.1} parent=43 // pred_check
          %p361 = pneg %p128
        $region46: #{tpu_custom_call.1} parent=43 // pred_check_branch
          %363 = sbr.rel (%p361) target = $region48
        $region47: #{tpu_custom_call.1} parent=43 // pred_region
          %s364 = sand.u32 %s113, 1
          %s365 = scalar_lea.sflag [#allocation4], %s364
          %s366 = sand.u32 %s113, 1
          %s367 = smul.addr %s366, 8
          %s368 = scalar_lea.vmem [#allocation5], %s367
          %370 = dma.done %s365, 128
        $region48: #{tpu_custom_call.1} parent=43 // pred_fallthru
          _
      $region44: #{tpu_custom_call.1} parent=5 // pred_fallthru
        _
    $region6: #{tpu_custom_call.1} parent=1 // loop_footer
      %s19 = sadd.s32 1, %s15
    $region7: #{tpu_custom_call.1} parent=1 // loop_footer_branch
      %14 = sbr.rel target = $region3
    $region8: #{tpu_custom_call.1} parent=1 // loop_exit
      _
    %371 = vsyncpa [#allocation3], 1
    %s372 = scalar_lea.sflag [#allocation3], 1
    %373 = vsyncpa %s372, 1
    %374 = vsyncpa [#allocation4], 1
    %s375 = scalar_lea.sflag [#allocation4], 1
    %376 = vsyncpa %s375, 1

</llo_original>
